<compile_context>
chip_gen: v6e
topology: v6e:2x2x1
jax: 0.10.0
libtpu: 0.0.40
codegen_flags: <defaults>
</compile_context>

<pallas_src>
import functools

import jax
import jax.numpy as jnp
from jax import lax
from jax.experimental import pallas as pl
from jax.experimental.pallas import tpu as pltpu

EPS = 1e-5


def _shift_lanes(x, s):
    """Lane roll: out[:, p] = x[:, (p - s) mod HW]  (jnp/pltpu.roll semantics)."""
    n = x.shape[-1]
    s = s % n
    if s == 0:
        return x
    return jnp.concatenate([x[:, n - s:], x[:, :n - s]], axis=1)


def _conv3x3_taps(x, H, W, col_first, col_last):
    """x: (C, H*W) f32 lane-dense image.  Returns the 9 reflect-padded 3x3 tap
    images, row-major in (dy, dx), each (C, H*W)."""
    HW = H * W
    # Row (dy) shifts with the reflected boundary row folded into the slices.
    row_m1 = jnp.concatenate([x[:, W:2 * W], x[:, :HW - W]], axis=1)       # x[h-1]; row -1 -> row 1
    row_p1 = jnp.concatenate([x[:, W:], x[:, HW - 2 * W:HW - W]], axis=1)  # x[h+1]; row H -> row H-2
    taps = []
    for r in (row_m1, x, row_p1):          # dy = -1, 0, +1
        right = _shift_lanes(r, 1)         # r[h, w-1]  (wrong at w=0: crosses rows)
        left = _shift_lanes(r, -1)         # r[h, w+1]  (wrong at w=W-1)
        taps.append(jnp.where(col_first, left, right))   # dx = -1 ; reflect w=-1 -> w=1
        taps.append(r)                                   # dx =  0
        taps.append(jnp.where(col_last, right, left))    # dx = +1 ; reflect w=W -> w=W-2
    return taps


def _conv3x3(x, w2d, b, H, W, col_first, col_last):
    """Reflect-padded 3x3 conv as one MXU matmul with K = 9*C_in.

    x: (C_in, H*W) f32, w2d: (C_out, 9*C_in) bf16, b: (C_out, 1) f32.
    Returns (C_out, H*W) f32.
    """
    taps = _conv3x3_taps(x, H, W, col_first, col_last)
    im2col = jnp.concatenate(taps, axis=0).astype(jnp.bfloat16)   # (9*C_in, HW) bf16 MXU feed
    y = jnp.dot(w2d, im2col, preferred_element_type=jnp.float32)  # f32 accumulation
    return y + b   # bias is mathematically a no-op through InstanceNorm; kept for fidelity


def _instance_norm(y, inv_hw):
    """Single-pass biased InstanceNorm statistics (sum / sum-of-squares), f32."""
    s = jnp.sum(y, axis=1, keepdims=True)
    s2 = jnp.sum(y * y, axis=1, keepdims=True)
    mean = s * inv_hw
    var = s2 * inv_hw - mean * mean
    return (y - mean) * lax.rsqrt(var + EPS)


def _resblock_kernel(x_ref, col_ref, w1_ref, b1_ref, w2_ref, b2_ref, o_ref,
                     *, H, W, Nb):
    C = x_ref.shape[1]
    HW = H * W
    inv_hw = 1.0 / HW

    # Hoisted once per grid step: boundary-column masks and the parameters.
    col = jnp.broadcast_to(col_ref[...], (C, HW))    # int32 column index per lane
    col_first = col == 0
    col_last = col == W - 1
    w1 = w1_ref[...]
    b1 = b1_ref[...]
    w2 = w2_ref[...]
    b2 = b2_ref[...]

    for i in range(Nb):  # static unroll over the images in this batch block
        x = x_ref[i].astype(jnp.float32)                      # (C, HW) lane-dense
        y = _conv3x3(x, w1, b1, H, W, col_first, col_last)    # conv1
        y = jnp.maximum(_instance_norm(y, inv_hw), 0.0)       # IN + ReLU (fused pass)
        y = _conv3x3(y, w2, b2, H, W, col_first, col_last)    # conv2
        y = _instance_norm(y, inv_hw)                         # IN
        o_ref[i] = (x + y).astype(o_ref.dtype)                # residual add


def residual_block(x, w1, b1, w2, b2, *, batch_block=None,
                   vmem_limit_bytes=48 * 1024 * 1024):
    """x: (N, C, H, W) NCHW; w: (C, C, 3, 3); b: (C,). Returns (N, C, H, W)."""
    N, C, H, W = x.shape
    HW = H * W

    # Lane-dense activations: (N, C, H*W).
    x_flat = x.reshape(N, C, HW)

    # Weights folded tap-major into the contraction: (C_out, 9*C_in), bf16.
    w1_2d = jnp.transpose(w1, (0, 2, 3, 1)).reshape(C, 9 * C).astype(jnp.bfloat16)
    w2_2d = jnp.transpose(w2, (0, 2, 3, 1)).reshape(C, 9 * C).astype(jnp.bfloat16)
    b1_c = b1.reshape(C, 1).astype(jnp.float32)
    b2_c = b2.reshape(C, 1).astype(jnp.float32)

    # Column index per lane (for the reflect boundary fix of the dx taps).
    col_idx = (jnp.arange(HW, dtype=jnp.int32) % W).reshape(1, HW)

    # Block several images per grid step so each step moves a useful number of
    # bytes (per-step overhead ~0.35 us); cap unrolling, keep it a divisor of N.
    if batch_block is None:
        per_img = C * HW * x.dtype.itemsize
        nb = int(max(1, min(N, 8, (2 * 1024 * 1024) // max(per_img, 1))))
        while N % nb:
            nb -= 1
    else:
        nb = batch_block
    assert N % nb == 0

    kernel = functools.partial(_resblock_kernel, H=H, W=W, Nb=nb)

    out_flat = pl.pallas_call(
        kernel,
        out_shape=jax.ShapeDtypeStruct((N, C, HW), x.dtype),
        grid_spec=pltpu.PrefetchScalarGridSpec(
            num_scalar_prefetch=0,
            grid=(N // nb,),
            in_specs=[
                pl.BlockSpec((nb, C, HW), lambda n: (n, 0, 0)),
                pl.BlockSpec((1, HW), lambda n: (0, 0)),
                pl.BlockSpec((C, 9 * C), lambda n: (0, 0)),
                pl.BlockSpec((C, 1), lambda n: (0, 0)),
                pl.BlockSpec((C, 9 * C), lambda n: (0, 0)),
                pl.BlockSpec((C, 1), lambda n: (0, 0)),
            ],
            out_specs=pl.BlockSpec((nb, C, HW), lambda n: (n, 0, 0)),
        ),
        compiler_params=pltpu.CompilerParams(
            dimension_semantics=("parallel",),
            vmem_limit_bytes=vmem_limit_bytes,
        ),
    )(x_flat, col_idx, w1_2d, b1_c, w2_2d, b2_c)

    return out_flat.reshape(N, C, H, W)


def _reference(x, w1, b1, w2, b2, conv_dtype=jnp.float32):
    """Pure-JAX reference of the PyTorch forward.  With conv_dtype=bfloat16 the
    conv operands are rounded to bf16 (matching the kernel's MXU feed) while
    all other math stays f32."""
    def conv_in(h, w, b, relu):
        hp = jnp.pad(h, ((0, 0), (0, 0), (1, 1), (1, 1)), mode="reflect")
        hp = hp.astype(conv_dtype).astype(jnp.float32)
        wq = w.astype(conv_dtype).astype(jnp.float32)
        y = lax.conv_general_dilated(
            hp, wq, (1, 1), "VALID",
            dimension_numbers=("NCHW", "OIHW", "NCHW"),
            precision=lax.Precision.HIGHEST)
        y = y + b[None, :, None, None]
        mean = jnp.mean(y, axis=(2, 3), keepdims=True)
        var = jnp.mean((y - mean) ** 2, axis=(2, 3), keepdims=True)
        y = (y - mean) * lax.rsqrt(var + EPS)
        return jnp.maximum(y, 0.0) if relu else y

    h = conv_in(x, w1, b1, relu=True)
    h = conv_in(h, w2, b2, relu=False)
    return x + h


if __name__ == "__main__":
    key = jax.random.PRNGKey(0)
    k_x, k_w1, k_b1, k_w2, k_b2 = jax.random.split(key, 5)

    N, C, H, W = 2, 4, 16, 16
    x = jax.random.normal(k_x, (N, C, H, W), jnp.float32)

    # Deterministic synthetic parameters (shapes match nn.Conv2d(C, C, 3)).
    fan_in = C * 3 * 3
    bound = 1.0 / (fan_in ** 0.5)
    w1 = jax.random.uniform(k_w1, (C, C, 3, 3), jnp.float32, -bound, bound)
    b1 = jax.random.uniform(k_b1, (C,), jnp.float32, -bound, bound)
    w2 = jax.random.uniform(k_w2, (C, C, 3, 3), jnp.float32, -bound, bound)
    b2 = jax.random.uniform(k_b2, (C,), jnp.float32, -bound, bound)

    out = jax.block_until_ready(residual_block(x, w1, b1, w2, b2))
    assert out.shape == (N, C, H, W)

    # Tight check vs a reference whose conv operands are rounded to bf16
    # exactly like the kernel's MXU feed (f32 accumulation in both).
    ref_bf16 = jax.block_until_ready(_reference(x, w1, b1, w2, b2, jnp.bfloat16))
    err_bf16 = float(jnp.max(jnp.abs(out - ref_bf16)))
    assert jnp.allclose(out, ref_bf16, atol=1e-2, rtol=1e-2), err_bf16

    # Looser check vs the true f32 module semantics (the bf16 MXU feed is the
    # only intentional deviation).
    ref_f32 = jax.block_until_ready(_reference(x, w1, b1, w2, b2, jnp.float32))
    err_f32 = float(jnp.max(jnp.abs(out - ref_f32)))
    assert jnp.allclose(out, ref_f32, atol=1e-1, rtol=1e-1), err_f32

    print("KERNEL_OK")
</pallas_src>

<mosaic_0001>
module attributes {stable_mosaic.version = 11 : i64} {
  func.func @_resblock_kernel(%arg0: i32, %arg1: memref<2x4x256xf32, #tpu.memory_space<vmem>>, %arg2: memref<1x256xi32, #tpu.memory_space<vmem>>, %arg3: memref<4x36xbf16, #tpu.memory_space<vmem>>, %arg4: memref<4x1xf32, #tpu.memory_space<vmem>>, %arg5: memref<4x36xbf16, #tpu.memory_space<vmem>>, %arg6: memref<4x1xf32, #tpu.memory_space<vmem>>, %arg7: memref<2x4x256xf32, #tpu.memory_space<vmem>>) attributes {dimension_semantics = [#tpu.dimension_semantics<parallel>], iteration_bounds = array<i64: 1>, scalar_prefetch = 0 : i64, scratch_operands = 0 : i64, tpu.core_type = #tpu.core_type<tc>, window_params = [{transform_indices = @transform_0, window_bounds = array<i64: 2, 4, 256>}, {pipeline_mode = #tpu.pipeline_mode<synchronous>, transform_indices = @transform_1, window_bounds = array<i64: 1, 256>}, {pipeline_mode = #tpu.pipeline_mode<synchronous>, transform_indices = @transform_2, window_bounds = array<i64: 4, 36>}, {pipeline_mode = #tpu.pipeline_mode<synchronous>, transform_indices = @transform_3, window_bounds = array<i64: 4, 1>}, {pipeline_mode = #tpu.pipeline_mode<synchronous>, transform_indices = @transform_4, window_bounds = array<i64: 4, 36>}, {pipeline_mode = #tpu.pipeline_mode<synchronous>, transform_indices = @transform_5, window_bounds = array<i64: 4, 1>}, {transform_indices = @transform_6, window_bounds = array<i64: 2, 4, 256>}]} {
    %c0 = arith.constant 0 : index
    %c0_0 = arith.constant 0 : index
    %0 = vector.load %arg2[%c0, %c0_0] : memref<1x256xi32, #tpu.memory_space<vmem>>, vector<1x256xi32>
    %1 = vector.shape_cast %0 : vector<1x256xi32> to vector<1x256xi32>
    %2 = vector.broadcast %1 : vector<1x256xi32> to vector<4x256xi32>
    %c0_i32 = arith.constant 0 : i32
    %3 = vector.broadcast %c0_i32 : i32 to vector<4x256xi32>
    %4 = arith.cmpi eq, %2, %3 : vector<4x256xi32>
    %c15_i32 = arith.constant 15 : i32
    %5 = vector.broadcast %c15_i32 : i32 to vector<4x256xi32>
    %6 = arith.cmpi eq, %2, %5 : vector<4x256xi32>
    %c0_1 = arith.constant 0 : index
    %c0_2 = arith.constant 0 : index
    %7 = vector.load %arg3[%c0_1, %c0_2] : memref<4x36xbf16, #tpu.memory_space<vmem>>, vector<4x36xbf16>
    %c0_3 = arith.constant 0 : index
    %c0_4 = arith.constant 0 : index
    %8 = vector.load %arg4[%c0_3, %c0_4] : memref<4x1xf32, #tpu.memory_space<vmem>>, vector<4x1xf32>
    %c0_5 = arith.constant 0 : index
    %c0_6 = arith.constant 0 : index
    %9 = vector.load %arg5[%c0_5, %c0_6] : memref<4x36xbf16, #tpu.memory_space<vmem>>, vector<4x36xbf16>
    %c0_7 = arith.constant 0 : index
    %c0_8 = arith.constant 0 : index
    %10 = vector.load %arg6[%c0_7, %c0_8] : memref<4x1xf32, #tpu.memory_space<vmem>>, vector<4x1xf32>
    %c0_9 = arith.constant 0 : index
    %c0_10 = arith.constant 0 : index
    %c0_11 = arith.constant 0 : index
    %11 = vector.load %arg1[%c0_9, %c0_10, %c0_11] : memref<2x4x256xf32, #tpu.memory_space<vmem>>, vector<1x4x256xf32>
    %12 = vector.shape_cast %11 : vector<1x4x256xf32> to vector<4x256xf32>
    %13 = vector.extract_strided_slice %12 {offsets = [0, 16], sizes = [4, 16], strides = [1, 1]} : vector<4x256xf32> to vector<4x16xf32>
    %14 = vector.extract_strided_slice %12 {offsets = [0, 0], sizes = [4, 240], strides = [1, 1]} : vector<4x256xf32> to vector<4x240xf32>
    %15 = tpu.concatenate %13, %14 in 1 : vector<4x16xf32>, vector<4x240xf32> -> vector<4x256xf32>
    %16 = vector.extract_strided_slice %12 {offsets = [0, 16], sizes = [4, 240], strides = [1, 1]} : vector<4x256xf32> to vector<4x240xf32>
    %17 = vector.extract_strided_slice %12 {offsets = [0, 224], sizes = [4, 16], strides = [1, 1]} : vector<4x256xf32> to vector<4x16xf32>
    %18 = tpu.concatenate %16, %17 in 1 : vector<4x240xf32>, vector<4x16xf32> -> vector<4x256xf32>
    %19 = vector.extract_strided_slice %15 {offsets = [0, 255], sizes = [4, 1], strides = [1, 1]} : vector<4x256xf32> to vector<4x1xf32>
    %20 = vector.extract_strided_slice %15 {offsets = [0, 0], sizes = [4, 255], strides = [1, 1]} : vector<4x256xf32> to vector<4x255xf32>
    %21 = tpu.concatenate %19, %20 in 1 : vector<4x1xf32>, vector<4x255xf32> -> vector<4x256xf32>
    %22 = vector.extract_strided_slice %15 {offsets = [0, 1], sizes = [4, 255], strides = [1, 1]} : vector<4x256xf32> to vector<4x255xf32>
    %23 = vector.extract_strided_slice %15 {offsets = [0, 0], sizes = [4, 1], strides = [1, 1]} : vector<4x256xf32> to vector<4x1xf32>
    %24 = tpu.concatenate %22, %23 in 1 : vector<4x255xf32>, vector<4x1xf32> -> vector<4x256xf32>
    %25 = arith.select %4, %24, %21 : vector<4x256xi1>, vector<4x256xf32>
    %26 = arith.select %6, %21, %24 : vector<4x256xi1>, vector<4x256xf32>
    %27 = vector.extract_strided_slice %12 {offsets = [0, 255], sizes = [4, 1], strides = [1, 1]} : vector<4x256xf32> to vector<4x1xf32>
    %28 = vector.extract_strided_slice %12 {offsets = [0, 0], sizes = [4, 255], strides = [1, 1]} : vector<4x256xf32> to vector<4x255xf32>
    %29 = tpu.concatenate %27, %28 in 1 : vector<4x1xf32>, vector<4x255xf32> -> vector<4x256xf32>
    %30 = vector.extract_strided_slice %12 {offsets = [0, 1], sizes = [4, 255], strides = [1, 1]} : vector<4x256xf32> to vector<4x255xf32>
    %31 = vector.extract_strided_slice %12 {offsets = [0, 0], sizes = [4, 1], strides = [1, 1]} : vector<4x256xf32> to vector<4x1xf32>
    %32 = tpu.concatenate %30, %31 in 1 : vector<4x255xf32>, vector<4x1xf32> -> vector<4x256xf32>
    %33 = arith.select %4, %32, %29 : vector<4x256xi1>, vector<4x256xf32>
    %34 = arith.select %6, %29, %32 : vector<4x256xi1>, vector<4x256xf32>
    %35 = vector.extract_strided_slice %18 {offsets = [0, 255], sizes = [4, 1], strides = [1, 1]} : vector<4x256xf32> to vector<4x1xf32>
    %36 = vector.extract_strided_slice %18 {offsets = [0, 0], sizes = [4, 255], strides = [1, 1]} : vector<4x256xf32> to vector<4x255xf32>
    %37 = tpu.concatenate %35, %36 in 1 : vector<4x1xf32>, vector<4x255xf32> -> vector<4x256xf32>
    %38 = vector.extract_strided_slice %18 {offsets = [0, 1], sizes = [4, 255], strides = [1, 1]} : vector<4x256xf32> to vector<4x255xf32>
    %39 = vector.extract_strided_slice %18 {offsets = [0, 0], sizes = [4, 1], strides = [1, 1]} : vector<4x256xf32> to vector<4x1xf32>
    %40 = tpu.concatenate %38, %39 in 1 : vector<4x255xf32>, vector<4x1xf32> -> vector<4x256xf32>
    %41 = arith.select %4, %40, %37 : vector<4x256xi1>, vector<4x256xf32>
    %42 = arith.select %6, %37, %40 : vector<4x256xi1>, vector<4x256xf32>
    %43 = tpu.concatenate %25, %15, %26, %33, %12, %34, %41, %18, %42 in 0 : vector<4x256xf32>, vector<4x256xf32>, vector<4x256xf32>, vector<4x256xf32>, vector<4x256xf32>, vector<4x256xf32>, vector<4x256xf32>, vector<4x256xf32>, vector<4x256xf32> -> vector<36x256xf32>
    %44 = arith.truncf %43 : vector<36x256xf32> to vector<36x256xbf16>
    %cst = arith.constant dense<0.000000e+00> : vector<4x256xf32>
    %45 = tpu.matmul %7, %44, %cst {dimension_numbers = #tpu.dot_dimension_numbers<[1], [0], [0], [1], [0, 0, 1, 1], [], []>} : vector<4x36xbf16>, vector<36x256xbf16>, vector<4x256xf32> -> vector<4x256xf32>
    %46 = vector.broadcast %8 : vector<4x1xf32> to vector<4x256xf32>
    %47 = arith.addf %45, %46 : vector<4x256xf32>
    %cst_12 = arith.constant dense<0.000000e+00> : vector<4xf32>
    %48 = vector.multi_reduction <add>, %47, %cst_12 [1] : vector<4x256xf32> to vector<4xf32>
    %49 = vector.shape_cast %48 : vector<4xf32> to vector<4x1xf32>
    %50 = arith.mulf %47, %47 : vector<4x256xf32>
    %cst_13 = arith.constant dense<0.000000e+00> : vector<4xf32>
    %51 = vector.multi_reduction <add>, %50, %cst_13 [1] : vector<4x256xf32> to vector<4xf32>
    %52 = vector.shape_cast %51 : vector<4xf32> to vector<4x1xf32>
    %cst_14 = arith.constant 3.906250e-03 : f32
    %53 = vector.broadcast %cst_14 : f32 to vector<4x1xf32>
    %54 = arith.mulf %49, %53 : vector<4x1xf32>
    %cst_15 = arith.constant 3.906250e-03 : f32
    %55 = vector.broadcast %cst_15 : f32 to vector<4x1xf32>
    %56 = arith.mulf %52, %55 : vector<4x1xf32>
    %57 = arith.mulf %54, %54 : vector<4x1xf32>
    %58 = arith.subf %56, %57 : vector<4x1xf32>
    %59 = vector.broadcast %54 : vector<4x1xf32> to vector<4x256xf32>
    %60 = arith.subf %47, %59 : vector<4x256xf32>
    %cst_16 = arith.constant 9.99999974E-6 : f32
    %61 = vector.broadcast %cst_16 : f32 to vector<4x1xf32>
    %62 = arith.addf %58, %61 : vector<4x1xf32>
    %63 = math.rsqrt %62 : vector<4x1xf32>
    %64 = vector.broadcast %63 : vector<4x1xf32> to vector<4x256xf32>
    %65 = arith.mulf %60, %64 : vector<4x256xf32>
    %cst_17 = arith.constant 0.000000e+00 : f32
    %66 = vector.broadcast %cst_17 : f32 to vector<4x256xf32>
    %67 = arith.maximumf %65, %66 : vector<4x256xf32>
    %68 = vector.extract_strided_slice %67 {offsets = [0, 16], sizes = [4, 16], strides = [1, 1]} : vector<4x256xf32> to vector<4x16xf32>
    %69 = vector.extract_strided_slice %67 {offsets = [0, 0], sizes = [4, 240], strides = [1, 1]} : vector<4x256xf32> to vector<4x240xf32>
    %70 = tpu.concatenate %68, %69 in 1 : vector<4x16xf32>, vector<4x240xf32> -> vector<4x256xf32>
    %71 = vector.extract_strided_slice %67 {offsets = [0, 16], sizes = [4, 240], strides = [1, 1]} : vector<4x256xf32> to vector<4x240xf32>
    %72 = vector.extract_strided_slice %67 {offsets = [0, 224], sizes = [4, 16], strides = [1, 1]} : vector<4x256xf32> to vector<4x16xf32>
    %73 = tpu.concatenate %71, %72 in 1 : vector<4x240xf32>, vector<4x16xf32> -> vector<4x256xf32>
    %74 = vector.extract_strided_slice %70 {offsets = [0, 255], sizes = [4, 1], strides = [1, 1]} : vector<4x256xf32> to vector<4x1xf32>
    %75 = vector.extract_strided_slice %70 {offsets = [0, 0], sizes = [4, 255], strides = [1, 1]} : vector<4x256xf32> to vector<4x255xf32>
    %76 = tpu.concatenate %74, %75 in 1 : vector<4x1xf32>, vector<4x255xf32> -> vector<4x256xf32>
    %77 = vector.extract_strided_slice %70 {offsets = [0, 1], sizes = [4, 255], strides = [1, 1]} : vector<4x256xf32> to vector<4x255xf32>
    %78 = vector.extract_strided_slice %70 {offsets = [0, 0], sizes = [4, 1], strides = [1, 1]} : vector<4x256xf32> to vector<4x1xf32>
    %79 = tpu.concatenate %77, %78 in 1 : vector<4x255xf32>, vector<4x1xf32> -> vector<4x256xf32>
    %80 = arith.select %4, %79, %76 : vector<4x256xi1>, vector<4x256xf32>
    %81 = arith.select %6, %76, %79 : vector<4x256xi1>, vector<4x256xf32>
    %82 = vector.extract_strided_slice %67 {offsets = [0, 255], sizes = [4, 1], strides = [1, 1]} : vector<4x256xf32> to vector<4x1xf32>
    %83 = vector.extract_strided_slice %67 {offsets = [0, 0], sizes = [4, 255], strides = [1, 1]} : vector<4x256xf32> to vector<4x255xf32>
    %84 = tpu.concatenate %82, %83 in 1 : vector<4x1xf32>, vector<4x255xf32> -> vector<4x256xf32>
    %85 = vector.extract_strided_slice %67 {offsets = [0, 1], sizes = [4, 255], strides = [1, 1]} : vector<4x256xf32> to vector<4x255xf32>
    %86 = vector.extract_strided_slice %67 {offsets = [0, 0], sizes = [4, 1], strides = [1, 1]} : vector<4x256xf32> to vector<4x1xf32>
    %87 = tpu.concatenate %85, %86 in 1 : vector<4x255xf32>, vector<4x1xf32> -> vector<4x256xf32>
    %88 = arith.select %4, %87, %84 : vector<4x256xi1>, vector<4x256xf32>
    %89 = arith.select %6, %84, %87 : vector<4x256xi1>, vector<4x256xf32>
    %90 = vector.extract_strided_slice %73 {offsets = [0, 255], sizes = [4, 1], strides = [1, 1]} : vector<4x256xf32> to vector<4x1xf32>
    %91 = vector.extract_strided_slice %73 {offsets = [0, 0], sizes = [4, 255], strides = [1, 1]} : vector<4x256xf32> to vector<4x255xf32>
    %92 = tpu.concatenate %90, %91 in 1 : vector<4x1xf32>, vector<4x255xf32> -> vector<4x256xf32>
    %93 = vector.extract_strided_slice %73 {offsets = [0, 1], sizes = [4, 255], strides = [1, 1]} : vector<4x256xf32> to vector<4x255xf32>
    %94 = vector.extract_strided_slice %73 {offsets = [0, 0], sizes = [4, 1], strides = [1, 1]} : vector<4x256xf32> to vector<4x1xf32>
    %95 = tpu.concatenate %93, %94 in 1 : vector<4x255xf32>, vector<4x1xf32> -> vector<4x256xf32>
    %96 = arith.select %4, %95, %92 : vector<4x256xi1>, vector<4x256xf32>
    %97 = arith.select %6, %92, %95 : vector<4x256xi1>, vector<4x256xf32>
    %98 = tpu.concatenate %80, %70, %81, %88, %67, %89, %96, %73, %97 in 0 : vector<4x256xf32>, vector<4x256xf32>, vector<4x256xf32>, vector<4x256xf32>, vector<4x256xf32>, vector<4x256xf32>, vector<4x256xf32>, vector<4x256xf32>, vector<4x256xf32> -> vector<36x256xf32>
    %99 = arith.truncf %98 : vector<36x256xf32> to vector<36x256xbf16>
    %cst_18 = arith.constant dense<0.000000e+00> : vector<4x256xf32>
    %100 = tpu.matmul %9, %99, %cst_18 {dimension_numbers = #tpu.dot_dimension_numbers<[1], [0], [0], [1], [0, 0, 1, 1], [], []>} : vector<4x36xbf16>, vector<36x256xbf16>, vector<4x256xf32> -> vector<4x256xf32>
    %101 = vector.broadcast %10 : vector<4x1xf32> to vector<4x256xf32>
    %102 = arith.addf %100, %101 : vector<4x256xf32>
    %cst_19 = arith.constant dense<0.000000e+00> : vector<4xf32>
    %103 = vector.multi_reduction <add>, %102, %cst_19 [1] : vector<4x256xf32> to vector<4xf32>
    %104 = vector.shape_cast %103 : vector<4xf32> to vector<4x1xf32>
    %105 = arith.mulf %102, %102 : vector<4x256xf32>
    %cst_20 = arith.constant dense<0.000000e+00> : vector<4xf32>
    %106 = vector.multi_reduction <add>, %105, %cst_20 [1] : vector<4x256xf32> to vector<4xf32>
    %107 = vector.shape_cast %106 : vector<4xf32> to vector<4x1xf32>
    %cst_21 = arith.constant 3.906250e-03 : f32
    %108 = vector.broadcast %cst_21 : f32 to vector<4x1xf32>
    %109 = arith.mulf %104, %108 : vector<4x1xf32>
    %cst_22 = arith.constant 3.906250e-03 : f32
    %110 = vector.broadcast %cst_22 : f32 to vector<4x1xf32>
    %111 = arith.mulf %107, %110 : vector<4x1xf32>
    %112 = arith.mulf %109, %109 : vector<4x1xf32>
    %113 = arith.subf %111, %112 : vector<4x1xf32>
    %114 = vector.broadcast %109 : vector<4x1xf32> to vector<4x256xf32>
    %115 = arith.subf %102, %114 : vector<4x256xf32>
    %cst_23 = arith.constant 9.99999974E-6 : f32
    %116 = vector.broadcast %cst_23 : f32 to vector<4x1xf32>
    %117 = arith.addf %113, %116 : vector<4x1xf32>
    %118 = math.rsqrt %117 : vector<4x1xf32>
    %119 = vector.broadcast %118 : vector<4x1xf32> to vector<4x256xf32>
    %120 = arith.mulf %115, %119 : vector<4x256xf32>
    %121 = arith.addf %12, %120 : vector<4x256xf32>
    %c0_24 = arith.constant 0 : index
    %c0_25 = arith.constant 0 : index
    %c0_26 = arith.constant 0 : index
    %122 = vector.load %arg7[%c0_24, %c0_25, %c0_26] : memref<2x4x256xf32, #tpu.memory_space<vmem>>, vector<1x4x256xf32>
    %123 = vector.shape_cast %122 : vector<1x4x256xf32> to vector<4x256xf32>
    %124 = vector.shape_cast %121 : vector<4x256xf32> to vector<1x4x256xf32>
    tpu.vector_store %arg7[%c0_24, %c0_25, %c0_26], %124 {strides = array<i32>} : memref<2x4x256xf32, #tpu.memory_space<vmem>>, vector<1x4x256xf32>,
    %c1 = arith.constant 1 : index
    %c0_27 = arith.constant 0 : index
    %c0_28 = arith.constant 0 : index
    %125 = vector.load %arg1[%c1, %c0_27, %c0_28] : memref<2x4x256xf32, #tpu.memory_space<vmem>>, vector<1x4x256xf32>
    %126 = vector.shape_cast %125 : vector<1x4x256xf32> to vector<4x256xf32>
    %127 = vector.extract_strided_slice %126 {offsets = [0, 16], sizes = [4, 16], strides = [1, 1]} : vector<4x256xf32> to vector<4x16xf32>
    %128 = vector.extract_strided_slice %126 {offsets = [0, 0], sizes = [4, 240], strides = [1, 1]} : vector<4x256xf32> to vector<4x240xf32>
    %129 = tpu.concatenate %127, %128 in 1 : vector<4x16xf32>, vector<4x240xf32> -> vector<4x256xf32>
    %130 = vector.extract_strided_slice %126 {offsets = [0, 16], sizes = [4, 240], strides = [1, 1]} : vector<4x256xf32> to vector<4x240xf32>
    %131 = vector.extract_strided_slice %126 {offsets = [0, 224], sizes = [4, 16], strides = [1, 1]} : vector<4x256xf32> to vector<4x16xf32>
    %132 = tpu.concatenate %130, %131 in 1 : vector<4x240xf32>, vector<4x16xf32> -> vector<4x256xf32>
    %133 = vector.extract_strided_slice %129 {offsets = [0, 255], sizes = [4, 1], strides = [1, 1]} : vector<4x256xf32> to vector<4x1xf32>
    %134 = vector.extract_strided_slice %129 {offsets = [0, 0], sizes = [4, 255], strides = [1, 1]} : vector<4x256xf32> to vector<4x255xf32>
    %135 = tpu.concatenate %133, %134 in 1 : vector<4x1xf32>, vector<4x255xf32> -> vector<4x256xf32>
    %136 = vector.extract_strided_slice %129 {offsets = [0, 1], sizes = [4, 255], strides = [1, 1]} : vector<4x256xf32> to vector<4x255xf32>
    %137 = vector.extract_strided_slice %129 {offsets = [0, 0], sizes = [4, 1], strides = [1, 1]} : vector<4x256xf32> to vector<4x1xf32>
    %138 = tpu.concatenate %136, %137 in 1 : vector<4x255xf32>, vector<4x1xf32> -> vector<4x256xf32>
    %139 = arith.select %4, %138, %135 : vector<4x256xi1>, vector<4x256xf32>
    %140 = arith.select %6, %135, %138 : vector<4x256xi1>, vector<4x256xf32>
    %141 = vector.extract_strided_slice %126 {offsets = [0, 255], sizes = [4, 1], strides = [1, 1]} : vector<4x256xf32> to vector<4x1xf32>
    %142 = vector.extract_strided_slice %126 {offsets = [0, 0], sizes = [4, 255], strides = [1, 1]} : vector<4x256xf32> to vector<4x255xf32>
    %143 = tpu.concatenate %141, %142 in 1 : vector<4x1xf32>, vector<4x255xf32> -> vector<4x256xf32>
    %144 = vector.extract_strided_slice %126 {offsets = [0, 1], sizes = [4, 255], strides = [1, 1]} : vector<4x256xf32> to vector<4x255xf32>
    %145 = vector.extract_strided_slice %126 {offsets = [0, 0], sizes = [4, 1], strides = [1, 1]} : vector<4x256xf32> to vector<4x1xf32>
    %146 = tpu.concatenate %144, %145 in 1 : vector<4x255xf32>, vector<4x1xf32> -> vector<4x256xf32>
    %147 = arith.select %4, %146, %143 : vector<4x256xi1>, vector<4x256xf32>
    %148 = arith.select %6, %143, %146 : vector<4x256xi1>, vector<4x256xf32>
    %149 = vector.extract_strided_slice %132 {offsets = [0, 255], sizes = [4, 1], strides = [1, 1]} : vector<4x256xf32> to vector<4x1xf32>
    %150 = vector.extract_strided_slice %132 {offsets = [0, 0], sizes = [4, 255], strides = [1, 1]} : vector<4x256xf32> to vector<4x255xf32>
    %151 = tpu.concatenate %149, %150 in 1 : vector<4x1xf32>, vector<4x255xf32> -> vector<4x256xf32>
    %152 = vector.extract_strided_slice %132 {offsets = [0, 1], sizes = [4, 255], strides = [1, 1]} : vector<4x256xf32> to vector<4x255xf32>
    %153 = vector.extract_strided_slice %132 {offsets = [0, 0], sizes = [4, 1], strides = [1, 1]} : vector<4x256xf32> to vector<4x1xf32>
    %154 = tpu.concatenate %152, %153 in 1 : vector<4x255xf32>, vector<4x1xf32> -> vector<4x256xf32>
    %155 = arith.select %4, %154, %151 : vector<4x256xi1>, vector<4x256xf32>
    %156 = arith.select %6, %151, %154 : vector<4x256xi1>, vector<4x256xf32>
    %157 = tpu.concatenate %139, %129, %140, %147, %126, %148, %155, %132, %156 in 0 : vector<4x256xf32>, vector<4x256xf32>, vector<4x256xf32>, vector<4x256xf32>, vector<4x256xf32>, vector<4x256xf32>, vector<4x256xf32>, vector<4x256xf32>, vector<4x256xf32> -> vector<36x256xf32>
    %158 = arith.truncf %157 : vector<36x256xf32> to vector<36x256xbf16>
    %cst_29 = arith.constant dense<0.000000e+00> : vector<4x256xf32>
    %159 = tpu.matmul %7, %158, %cst_29 {dimension_numbers = #tpu.dot_dimension_numbers<[1], [0], [0], [1], [0, 0, 1, 1], [], []>} : vector<4x36xbf16>, vector<36x256xbf16>, vector<4x256xf32> -> vector<4x256xf32>
    %160 = vector.broadcast %8 : vector<4x1xf32> to vector<4x256xf32>
    %161 = arith.addf %159, %160 : vector<4x256xf32>
    %cst_30 = arith.constant dense<0.000000e+00> : vector<4xf32>
    %162 = vector.multi_reduction <add>, %161, %cst_30 [1] : vector<4x256xf32> to vector<4xf32>
    %163 = vector.shape_cast %162 : vector<4xf32> to vector<4x1xf32>
    %164 = arith.mulf %161, %161 : vector<4x256xf32>
    %cst_31 = arith.constant dense<0.000000e+00> : vector<4xf32>
    %165 = vector.multi_reduction <add>, %164, %cst_31 [1] : vector<4x256xf32> to vector<4xf32>
    %166 = vector.shape_cast %165 : vector<4xf32> to vector<4x1xf32>
    %cst_32 = arith.constant 3.906250e-03 : f32
    %167 = vector.broadcast %cst_32 : f32 to vector<4x1xf32>
    %168 = arith.mulf %163, %167 : vector<4x1xf32>
    %cst_33 = arith.constant 3.906250e-03 : f32
    %169 = vector.broadcast %cst_33 : f32 to vector<4x1xf32>
    %170 = arith.mulf %166, %169 : vector<4x1xf32>
    %171 = arith.mulf %168, %168 : vector<4x1xf32>
    %172 = arith.subf %170, %171 : vector<4x1xf32>
    %173 = vector.broadcast %168 : vector<4x1xf32> to vector<4x256xf32>
    %174 = arith.subf %161, %173 : vector<4x256xf32>
    %cst_34 = arith.constant 9.99999974E-6 : f32
    %175 = vector.broadcast %cst_34 : f32 to vector<4x1xf32>
    %176 = arith.addf %172, %175 : vector<4x1xf32>
    %177 = math.rsqrt %176 : vector<4x1xf32>
    %178 = vector.broadcast %177 : vector<4x1xf32> to vector<4x256xf32>
    %179 = arith.mulf %174, %178 : vector<4x256xf32>
    %cst_35 = arith.constant 0.000000e+00 : f32
    %180 = vector.broadcast %cst_35 : f32 to vector<4x256xf32>
    %181 = arith.maximumf %179, %180 : vector<4x256xf32>
    %182 = vector.extract_strided_slice %181 {offsets = [0, 16], sizes = [4, 16], strides = [1, 1]} : vector<4x256xf32> to vector<4x16xf32>
    %183 = vector.extract_strided_slice %181 {offsets = [0, 0], sizes = [4, 240], strides = [1, 1]} : vector<4x256xf32> to vector<4x240xf32>
    %184 = tpu.concatenate %182, %183 in 1 : vector<4x16xf32>, vector<4x240xf32> -> vector<4x256xf32>
    %185 = vector.extract_strided_slice %181 {offsets = [0, 16], sizes = [4, 240], strides = [1, 1]} : vector<4x256xf32> to vector<4x240xf32>
    %186 = vector.extract_strided_slice %181 {offsets = [0, 224], sizes = [4, 16], strides = [1, 1]} : vector<4x256xf32> to vector<4x16xf32>
    %187 = tpu.concatenate %185, %186 in 1 : vector<4x240xf32>, vector<4x16xf32> -> vector<4x256xf32>
    %188 = vector.extract_strided_slice %184 {offsets = [0, 255], sizes = [4, 1], strides = [1, 1]} : vector<4x256xf32> to vector<4x1xf32>
    %189 = vector.extract_strided_slice %184 {offsets = [0, 0], sizes = [4, 255], strides = [1, 1]} : vector<4x256xf32> to vector<4x255xf32>
    %190 = tpu.concatenate %188, %189 in 1 : vector<4x1xf32>, vector<4x255xf32> -> vector<4x256xf32>
    %191 = vector.extract_strided_slice %184 {offsets = [0, 1], sizes = [4, 255], strides = [1, 1]} : vector<4x256xf32> to vector<4x255xf32>
    %192 = vector.extract_strided_slice %184 {offsets = [0, 0], sizes = [4, 1], strides = [1, 1]} : vector<4x256xf32> to vector<4x1xf32>
    %193 = tpu.concatenate %191, %192 in 1 : vector<4x255xf32>, vector<4x1xf32> -> vector<4x256xf32>
    %194 = arith.select %4, %193, %190 : vector<4x256xi1>, vector<4x256xf32>
    %195 = arith.select %6, %190, %193 : vector<4x256xi1>, vector<4x256xf32>
    %196 = vector.extract_strided_slice %181 {offsets = [0, 255], sizes = [4, 1], strides = [1, 1]} : vector<4x256xf32> to vector<4x1xf32>
    %197 = vector.extract_strided_slice %181 {offsets = [0, 0], sizes = [4, 255], strides = [1, 1]} : vector<4x256xf32> to vector<4x255xf32>
    %198 = tpu.concatenate %196, %197 in 1 : vector<4x1xf32>, vector<4x255xf32> -> vector<4x256xf32>
    %199 = vector.extract_strided_slice %181 {offsets = [0, 1], sizes = [4, 255], strides = [1, 1]} : vector<4x256xf32> to vector<4x255xf32>
    %200 = vector.extract_strided_slice %181 {offsets = [0, 0], sizes = [4, 1], strides = [1, 1]} : vector<4x256xf32> to vector<4x1xf32>
    %201 = tpu.concatenate %199, %200 in 1 : vector<4x255xf32>, vector<4x1xf32> -> vector<4x256xf32>
    %202 = arith.select %4, %201, %198 : vector<4x256xi1>, vector<4x256xf32>
    %203 = arith.select %6, %198, %201 : vector<4x256xi1>, vector<4x256xf32>
    %204 = vector.extract_strided_slice %187 {offsets = [0, 255], sizes = [4, 1], strides = [1, 1]} : vector<4x256xf32> to vector<4x1xf32>
    %205 = vector.extract_strided_slice %187 {offsets = [0, 0], sizes = [4, 255], strides = [1, 1]} : vector<4x256xf32> to vector<4x255xf32>
    %206 = tpu.concatenate %204, %205 in 1 : vector<4x1xf32>, vector<4x255xf32> -> vector<4x256xf32>
    %207 = vector.extract_strided_slice %187 {offsets = [0, 1], sizes = [4, 255], strides = [1, 1]} : vector<4x256xf32> to vector<4x255xf32>
    %208 = vector.extract_strided_slice %187 {offsets = [0, 0], sizes = [4, 1], strides = [1, 1]} : vector<4x256xf32> to vector<4x1xf32>
    %209 = tpu.concatenate %207, %208 in 1 : vector<4x255xf32>, vector<4x1xf32> -> vector<4x256xf32>
    %210 = arith.select %4, %209, %206 : vector<4x256xi1>, vector<4x256xf32>
    %211 = arith.select %6, %206, %209 : vector<4x256xi1>, vector<4x256xf32>
    %212 = tpu.concatenate %194, %184, %195, %202, %181, %203, %210, %187, %211 in 0 : vector<4x256xf32>, vector<4x256xf32>, vector<4x256xf32>, vector<4x256xf32>, vector<4x256xf32>, vector<4x256xf32>, vector<4x256xf32>, vector<4x256xf32>, vector<4x256xf32> -> vector<36x256xf32>
    %213 = arith.truncf %212 : vector<36x256xf32> to vector<36x256xbf16>
    %cst_36 = arith.constant dense<0.000000e+00> : vector<4x256xf32>
    %214 = tpu.matmul %9, %213, %cst_36 {dimension_numbers = #tpu.dot_dimension_numbers<[1], [0], [0], [1], [0, 0, 1, 1], [], []>} : vector<4x36xbf16>, vector<36x256xbf16>, vector<4x256xf32> -> vector<4x256xf32>
    %215 = vector.broadcast %10 : vector<4x1xf32> to vector<4x256xf32>
    %216 = arith.addf %214, %215 : vector<4x256xf32>
    %cst_37 = arith.constant dense<0.000000e+00> : vector<4xf32>
    %217 = vector.multi_reduction <add>, %216, %cst_37 [1] : vector<4x256xf32> to vector<4xf32>
    %218 = vector.shape_cast %217 : vector<4xf32> to vector<4x1xf32>
    %219 = arith.mulf %216, %216 : vector<4x256xf32>
    %cst_38 = arith.constant dense<0.000000e+00> : vector<4xf32>
    %220 = vector.multi_reduction <add>, %219, %cst_38 [1] : vector<4x256xf32> to vector<4xf32>
    %221 = vector.shape_cast %220 : vector<4xf32> to vector<4x1xf32>
    %cst_39 = arith.constant 3.906250e-03 : f32
    %222 = vector.broadcast %cst_39 : f32 to vector<4x1xf32>
    %223 = arith.mulf %218, %222 : vector<4x1xf32>
    %cst_40 = arith.constant 3.906250e-03 : f32
    %224 = vector.broadcast %cst_40 : f32 to vector<4x1xf32>
    %225 = arith.mulf %221, %224 : vector<4x1xf32>
    %226 = arith.mulf %223, %223 : vector<4x1xf32>
    %227 = arith.subf %225, %226 : vector<4x1xf32>
    %228 = vector.broadcast %223 : vector<4x1xf32> to vector<4x256xf32>
    %229 = arith.subf %216, %228 : vector<4x256xf32>
    %cst_41 = arith.constant 9.99999974E-6 : f32
    %230 = vector.broadcast %cst_41 : f32 to vector<4x1xf32>
    %231 = arith.addf %227, %230 : vector<4x1xf32>
    %232 = math.rsqrt %231 : vector<4x1xf32>
    %233 = vector.broadcast %232 : vector<4x1xf32> to vector<4x256xf32>
    %234 = arith.mulf %229, %233 : vector<4x256xf32>
    %235 = arith.addf %126, %234 : vector<4x256xf32>
    %c1_42 = arith.constant 1 : index
    %c0_43 = arith.constant 0 : index
    %c0_44 = arith.constant 0 : index
    %236 = vector.load %arg7[%c1_42, %c0_43, %c0_44] : memref<2x4x256xf32, #tpu.memory_space<vmem>>, vector<1x4x256xf32>
    %237 = vector.shape_cast %236 : vector<1x4x256xf32> to vector<4x256xf32>
    %238 = vector.shape_cast %235 : vector<4x256xf32> to vector<1x4x256xf32>
    tpu.vector_store %arg7[%c1_42, %c0_43, %c0_44], %238 {strides = array<i32>} : memref<2x4x256xf32, #tpu.memory_space<vmem>>, vector<1x4x256xf32>,
    return
  }
  func.func @transform_0(%arg0: i32) -> (i32, i32, i32) {
    %c0_i32 = arith.constant 0 : i32
    %c0_i32_0 = arith.constant 0 : i32
    %c0_i32_1 = arith.constant 0 : i32
    return %arg0, %c0_i32, %c0_i32_0 : i32, i32, i32
  }
  func.func @transform_1(%arg0: i32) -> (i32, i32) {
    %c0_i32 = arith.constant 0 : i32
    %c0_i32_0 = arith.constant 0 : i32
    %c0_i32_1 = arith.constant 0 : i32
    return %c0_i32, %c0_i32_0 : i32, i32
  }
  func.func @transform_2(%arg0: i32) -> (i32, i32) {
    %c0_i32 = arith.constant 0 : i32
    %c0_i32_0 = arith.constant 0 : i32
    %c0_i32_1 = arith.constant 0 : i32
    return %c0_i32, %c0_i32_0 : i32, i32
  }
  func.func @transform_3(%arg0: i32) -> (i32, i32) {
    %c0_i32 = arith.constant 0 : i32
    %c0_i32_0 = arith.constant 0 : i32
    %c0_i32_1 = arith.constant 0 : i32
    return %c0_i32, %c0_i32_0 : i32, i32
  }
  func.func @transform_4(%arg0: i32) -> (i32, i32) {
    %c0_i32 = arith.constant 0 : i32
    %c0_i32_0 = arith.constant 0 : i32
    %c0_i32_1 = arith.constant 0 : i32
    return %c0_i32, %c0_i32_0 : i32, i32
  }
  func.func @transform_5(%arg0: i32) -> (i32, i32) {
    %c0_i32 = arith.constant 0 : i32
    %c0_i32_0 = arith.constant 0 : i32
    %c0_i32_1 = arith.constant 0 : i32
    return %c0_i32, %c0_i32_0 : i32, i32
  }
  func.func @transform_6(%arg0: i32) -> (i32, i32, i32) {
    %c0_i32 = arith.constant 0 : i32
    %c0_i32_0 = arith.constant 0 : i32
    %c0_i32_1 = arith.constant 0 : i32
    return %arg0, %c0_i32, %c0_i32_0 : i32, i32, i32
  }
}

</mosaic_0001>

<llo_original>
// kernel: tpu_custom_call.1
$region0: #{tpu_custom_call.1}
  #allocation0 [shape = 'u32[]', space=smem, size = 0x4, offset = 0x4, fixed_abs, tag = 'smem constant byte address 0x4 - core index']
  #allocation1 [shape = 'u32[144,128]{1,0:T(1,128)}', space=vmem, size = 0x12000, scoped, tag = 'internal scratch']
  %s0 = inlined_call_operand.hbm [shape: f32[2,4,256], index: 0, kind: input, shape index: {}]
  %s1 = inlined_call_operand.vmem [shape: s32[1,256], index: 1, kind: input, shape index: {}]
  %s2 = inlined_call_operand.vmem [shape: bf16[4,36], index: 2, kind: input, shape index: {}]
  %s3 = inlined_call_operand.vmem [shape: f32[4,1], index: 3, kind: input, shape index: {}]
  %s4 = inlined_call_operand.vmem [shape: bf16[4,36], index: 4, kind: input, shape index: {}]
  %s5 = inlined_call_operand.vmem [shape: f32[4,1], index: 5, kind: input, shape index: {}]
  %s6 = inlined_call_operand.hbm [shape: f32[2,4,256], index: 6, kind: output, shape index: {}]
  %s7 = sld [smem:[#allocation0]]
  $region38: #{tpu_custom_call.1} parent=0
    _
  %s9 = ssub.s32 1, %s7
  %s10 = scalar_select 0, %s9, %s7
  $region1: #{tpu_custom_call.1} parent=0
    #allocation2 [shape = 'u8[8192]{0}', space=vmem, size = 0x2000, scoped, tag = 'input window, operand 0, single buffered']
    #allocation3 [shape = 's32[1]{0}', space=sflag, size = 0x4, scoped, tag = 'scoped memory for tpu_custom_call.1']
    #allocation4 [shape = 's32[1]{0}', space=sflag, size = 0x4, scoped, tag = 'scoped memory for tpu_custom_call.1']
    #allocation5 [shape = 'u8[8192]{0}', space=vmem, size = 0x2000, scoped, tag = 'output window, operand 0, single buffered']
    %11 = vsyncpa [#allocation3], 0
    %12 = vsyncpa [#allocation4], 0
    // Predicated region
    $region2: #{tpu_custom_call.1} parent=1 // pred_check
      _
    $region3: #{tpu_custom_call.1} parent=1 // pred_check_branch
      %14 = sbr.rel (0) target = $region5
    $region4: #{tpu_custom_call.1} parent=1 // pred_region
      %s16 = ssub.s32 256, 256
      %17 = vsyncadd [#allocation3], %s16
      %s18 = sshll.u32 [#allocation2], 4
      %s19 = int_to_ptr.vmem [resolvable:$true] %s18
      %24 = dma.hbm_to_vmem [thread:$0]  %s0, 256, %s19, [#allocation3], 128, 128, 8
    $region5: #{tpu_custom_call.1} parent=1 // pred_fallthru
      _
    // Predicated region
    $region6: #{tpu_custom_call.1} parent=1 // pred_check
      _
    $region7: #{tpu_custom_call.1} parent=1 // pred_check_branch
      %26 = sbr.rel (0) target = $region9
    $region8: #{tpu_custom_call.1} parent=1 // pred_region
      _
    $region9: #{tpu_custom_call.1} parent=1 // pred_fallthru
      _
    // Predicated region
    $region10: #{tpu_custom_call.1} parent=1 // pred_check
      _
    $region11: #{tpu_custom_call.1} parent=1 // pred_check_branch
      %28 = sbr.rel (0) target = $region13
    $region12: #{tpu_custom_call.1} parent=1 // pred_region
      _
    $region13: #{tpu_custom_call.1} parent=1 // pred_fallthru
      _
    // Predicated region
    $region14: #{tpu_custom_call.1} parent=1 // pred_check
      _
    $region15: #{tpu_custom_call.1} parent=1 // pred_check_branch
      %30 = sbr.rel (0) target = $region17
    $region16: #{tpu_custom_call.1} parent=1 // pred_region
      _
    $region17: #{tpu_custom_call.1} parent=1 // pred_fallthru
      _
    // Predicated region
    $region18: #{tpu_custom_call.1} parent=1 // pred_check
      _
    $region19: #{tpu_custom_call.1} parent=1 // pred_check_branch
      %32 = sbr.rel (0) target = $region21
    $region20: #{tpu_custom_call.1} parent=1 // pred_region
      _
    $region21: #{tpu_custom_call.1} parent=1 // pred_fallthru
      _
    // Predicated region
    $region22: #{tpu_custom_call.1} parent=1 // pred_check
      _
    $region23: #{tpu_custom_call.1} parent=1 // pred_check_branch
      %34 = sbr.rel (0) target = $region25
    $region24: #{tpu_custom_call.1} parent=1 // pred_region
      _
    $region25: #{tpu_custom_call.1} parent=1 // pred_fallthru
      _
    // Predicated region
    $region26: #{tpu_custom_call.1} parent=1 // pred_check
      _
    $region27: #{tpu_custom_call.1} parent=1 // pred_check_branch
      %36 = sbr.rel (0) target = $region29
    $region28: #{tpu_custom_call.1} parent=1 // pred_region
      %37 = dma.done [#allocation3], 256
    $region29: #{tpu_custom_call.1} parent=1 // pred_fallthru
      _
    %v39 = vld [vmem:[%s1] sm:$0x3]
    %v40 = vlaneseq
    %v41 = vshrl.u32 %v40, 7
    %v42 = vsub.s32 0, %v41
    %v43 = vrot.slane %v39, %v42
    %v44 = vlaneseq
    %v45 = vshrl.u32 %v44, 7
    %v46 = vsub.s32 1, %v45
    %v47 = vrot.slane %v39, %v46
    %vm48 = vcmp.eq.s32.totalorder %v43, 0
    %vm49 = vcmp.eq.s32.totalorder %v47, 0
    %vm50 = vcmp.eq.s32.totalorder %v43, 15
    %vm51 = vcmp.eq.s32.totalorder %v47, 15
    %v52 = vld [vmem:[%s2] sm:$0x3]
    %v53 = vld [vmem:[%s3] sm:$0xf]
    %v54 = vld [vmem:[%s4] sm:$0x3]
    %v55 = vld [vmem:[%s5] sm:$0xf]
    %v56 = vld [vmem:[#allocation2] sm:$0xff]
    %58 = vrot.lane.b32.xlu0 %v56, 112
    %v59 = vpop.permute.xlu0 %58
    %v61 = vcombine.high %v56, %v56
    %62 = vrot.lane.b32.xlu0 %v56, 16
    %v63 = vpop.permute.xlu0 %62
    %64 = vrot.lane.b32.xlu0 %v61, 16
    %v65 = vpop.permute.xlu0 %64
    %vm66 = vcmask 130048
    %v67 = vsel %vm66, %v63, %v65
    %v69 = vsel %vm66, %v59, %v63
    %70 = vrot.lane.b32.xlu0 %v61, 112
    %v71 = vpop.permute.xlu0 %70
    %vm72 = vcmask 916480
    %v73 = vsel %vm72, %v59, %v71
    %v76 = vsel %vm72, %v71, %v65
    %77 = vrot.lane.b32.xlu0 %v67, 1
    %v78 = vpop.permute.xlu0 %77
    %81 = vrot.lane.b32.xlu0 %v69, 1
    %v82 = vpop.permute.xlu0 %81
    %vm83 = vcmask 7168
    %v84 = vsel %vm83, %v82, %v78
    %v87 = vsel %vm83, %v78, %v82
    %88 = vrot.lane.b32.xlu0 %v69, 127
    %v89 = vpop.permute.xlu0 %88
    %90 = vrot.lane.b32.xlu0 %v67, 127
    %v91 = vpop.permute.xlu0 %90
    %vm92 = vcmask 1039360
    %v93 = vsel %vm92, %v89, %v91
    %v97 = vsel %vm92, %v91, %v89
    %v98 = vsel %vm48, %v93, %v87
    %v99 = vsel %vm49, %v97, %v84
    %v100 = vsel %vm50, %v87, %v93
    %v101 = vsel %vm51, %v84, %v97
    %102 = vrot.lane.b32.xlu0 %v61, 1
    %v103 = vpop.permute.xlu0 %102
    %105 = vrot.lane.b32.xlu0 %v56, 1
    %v106 = vpop.permute.xlu0 %105
    %v107 = vsel %vm83, %v106, %v103
    %v110 = vsel %vm83, %v103, %v106
    %111 = vrot.lane.b32.xlu0 %v56, 127
    %v112 = vpop.permute.xlu0 %111
    %113 = vrot.lane.b32.xlu0 %v61, 127
    %v114 = vpop.permute.xlu0 %113
    %v115 = vsel %vm92, %v112, %v114
    %v119 = vsel %vm92, %v114, %v112
    %v120 = vsel %vm48, %v115, %v110
    %v121 = vsel %vm49, %v119, %v107
    %v122 = vsel %vm50, %v110, %v115
    %v123 = vsel %vm51, %v107, %v119
    %125 = vrot.lane.b32.xlu0 %v76, 1
    %v126 = vpop.permute.xlu0 %125
    %128 = vrot.lane.b32.xlu0 %v73, 1
    %v129 = vpop.permute.xlu0 %128
    %v130 = vsel %vm83, %v129, %v126
    %v133 = vsel %vm83, %v126, %v129
    %134 = vrot.lane.b32.xlu0 %v73, 127
    %v135 = vpop.permute.xlu0 %134
    %136 = vrot.lane.b32.xlu0 %v76, 127
    %v137 = vpop.permute.xlu0 %136
    %v138 = vsel %vm92, %v135, %v137
    %v142 = vsel %vm92, %v137, %v135
    %v143 = vsel %vm48, %v138, %v133
    %v144 = vsel %vm49, %v142, %v130
    %v145 = vsel %vm50, %v133, %v138
    %v146 = vsel %vm51, %v130, %v142
    %v147 = vrot.slane %v69, 4
    %v148 = vrot.slane %v67, 4
    %v153 = vrot.slane %v120, 4
    %v154 = vrot.slane %v121, 4
    %v160 = vrot.slane %v122, 4
    %v161 = vrot.slane %v123, 4
    %v164 = vrot.slane %v73, 4
    %v165 = vrot.slane %v76, 4
    %vm168 = vcmask 1043456
    %v169 = vsel %vm168, %v98, %v147
    %v170 = vsel %vm168, %v99, %v148
    %v171 = vsel %vm168, %v100, %v153
    %v172 = vsel %vm168, %v101, %v154
    %v173 = vsel %vm168, %v56, %v160
    %v174 = vsel %vm168, %v61, %v161
    %v175 = vsel %vm168, %v143, %v164
    %v176 = vsel %vm168, %v144, %v165
    %v177 = vpack.c.bf16 %v171, %v169
    %v178 = vpack.c.bf16 %v172, %v170
    %v179 = vpack.c.bf16 %v175, %v173
    %v180 = vpack.c.bf16 %v176, %v174
    %v181 = vpack.c.bf16 %v145, %v145
    %v182 = vpack.c.bf16 %v146, %v146
    %184 = vset.pattern.permute.xlu0 0
    %185 = vperm.xlu0 %184, %v53
    %v186 = vpop.permute.xlu0 %185
    %vm188 = vcmask 293888
    %v190 = vsel %vm188, %v52, 0
    %vm192 = vcmask 1041408
    %v194 = vsel %vm192, %v181, 0
    %v197 = vsel %vm192, %v182, 0
    %199 = vmatprep.subr.bf16.mxu0 0
    %200 = vmatpush1.bf16.msra.mxu0 0
    %201 = vmatprep.subr.bf16.mxu0 0
    %202 = vmatpush1.bf16.msra.mxu0 0
    %203 = vmatprep.subr.bf16.mxu0 0
    %204 = vmatpush1.bf16.msra.mxu0 0
    %205 = vmatprep.subr.bf16.mxu0 0
    %206 = vmatpush1.bf16.msra.mxu0 0
    %207 = vmatprep.subr.bf16.mxu0 0
    %208 = vmatpush1.bf16.msra.mxu0 0
    %209 = vmatprep.subr.bf16.mxu0 %v197
    %210 = vmatpush1.bf16.msra.mxu0 %v194
    %211 = vmatprep.subr.bf16.mxu0 %v180
    %212 = vmatpush1.bf16.msra.mxu0 %v179
    %213 = vmatprep.subr.bf16.mxu0 %v178
    %214 = vmatpush1.bf16.msra.mxu0 %v177
    %215 = vmatprep.subr.bf16.mxu0 0
    %216 = vmatpush2.bf16.msra.mxu0 0
    %217 = vmatprep.subr.bf16.mxu0 0
    %218 = vmatpush2.bf16.msra.mxu0 0
    %219 = vmatprep.subr.bf16.mxu0 0
    %220 = vmatpush2.bf16.msra.mxu0 0
    %221 = vmatprep.subr.bf16.mxu0 0
    %222 = vmatpush2.bf16.msra.mxu0 0
    %223 = vmatprep.subr.bf16.mxu0 0
    %224 = vmatpush2.bf16.msra.mxu0 0
    %225 = vmatprep.subr.bf16.mxu0 0
    %226 = vmatpush2.bf16.msra.mxu0 0
    %227 = vmatprep.subr.bf16.mxu0 0
    %228 = vmatpush2.bf16.msra.mxu0 0
    %229 = vmatprep.subr.bf16.mxu0 0
    %230 = vmatpush2.bf16.msra.mxu0 0
    %231 = vmatprep.mubr.bf16.mxu0 0
    %232 = vmatmul.mubr.bf16.gmra.mxu0 %v190
    %v233 = vpop.f32.mrf.mxu0
    %v234 = vadd.f32 %v186, %v233
    %v235 = vpop.f32.mrf.mxu0
    %v236 = vadd.f32 %v186, %v235
    %v237 = vpop.f32.mrf.mxu0
    %v238 = vpop.f32.mrf.mxu0
    %239 = vdwg.mxu0
    %v240 = vsel %vm168, %v234, 0.0
    %v241 = vsel %vm168, %v236, 0.0
    %v242 = vadd.f32 %v240, %v241
    %243 = vadd.xlane.f32.xlu0 %v242
    %v244 = vpop.xlane.xlu0 %243
    %v245 = vmul.f32 %v234, %v234
    %v246 = vmul.f32 %v236, %v236
    %v247 = vsel %vm168, %v245, 0.0
    %v248 = vsel %vm168, %v246, 0.0
    %v249 = vadd.f32 %v247, %v248
    %250 = vadd.xlane.f32.xlu0 %v249
    %v251 = vpop.xlane.xlu0 %250
    %v252 = vmul.f32 %v244, 0.00390625
    %v253 = vmul.f32 %v251, 0.00390625
    %v254 = vmul.f32 %v252, %v252
    %v255 = vsub.f32 %v253, %v254
    %v256 = vsub.f32 %v234, %v252
    %v257 = vsub.f32 %v236, %v252
    %v258 = vadd.f32 %v255, 1e-05
    %v259 = vrsqrt.pop %v258
    %v260 = vmul.f32 %v256, %v259
    %v261 = vmul.f32 %v257, %v259
    %v262 = vmax.f32 %v260, 0.0
    %v263 = vmax.f32 %v261, 0.0
    %265 = vrot.lane.b32.xlu0 %v262, 112
    %v266 = vpop.permute.xlu0 %265
    %269 = vrot.lane.b32.xlu0 %v262, 16
    %v270 = vpop.permute.xlu0 %269
    %271 = vrot.lane.b32.xlu0 %v263, 16
    %v272 = vpop.permute.xlu0 %271
    %v273 = vsel %vm66, %v270, %v272
    %v275 = vsel %vm66, %v266, %v270
    %276 = vrot.lane.b32.xlu0 %v263, 112
    %v277 = vpop.permute.xlu0 %276
    %v278 = vsel %vm72, %v266, %v277
    %v281 = vsel %vm72, %v277, %v272
    %282 = vrot.lane.b32.xlu0 %v273, 1
    %v283 = vpop.permute.xlu0 %282
    %286 = vrot.lane.b32.xlu0 %v275, 1
    %v287 = vpop.permute.xlu0 %286
    %v288 = vsel %vm83, %v287, %v283
    %v291 = vsel %vm83, %v283, %v287
    %292 = vrot.lane.b32.xlu0 %v275, 127
    %v293 = vpop.permute.xlu0 %292
    %294 = vrot.lane.b32.xlu0 %v273, 127
    %v295 = vpop.permute.xlu0 %294
    %v296 = vsel %vm92, %v293, %v295
    %v300 = vsel %vm92, %v295, %v293
    %v301 = vsel %vm48, %v296, %v291
    %v302 = vsel %vm49, %v300, %v288
    %v303 = vsel %vm50, %v291, %v296
    %v304 = vsel %vm51, %v288, %v300
    %305 = vrot.lane.b32.xlu0 %v263, 1
    %v306 = vpop.permute.xlu0 %305
    %308 = vrot.lane.b32.xlu0 %v262, 1
    %v309 = vpop.permute.xlu0 %308
    %v310 = vsel %vm83, %v309, %v306
    %v313 = vsel %vm83, %v306, %v309
    %314 = vrot.lane.b32.xlu0 %v262, 127
    %v315 = vpop.permute.xlu0 %314
    %316 = vrot.lane.b32.xlu0 %v263, 127
    %v317 = vpop.permute.xlu0 %316
    %v318 = vsel %vm92, %v315, %v317
    %v322 = vsel %vm92, %v317, %v315
    %v323 = vsel %vm48, %v318, %v313
    %v324 = vsel %vm49, %v322, %v310
    %v325 = vsel %vm50, %v313, %v318
    %v326 = vsel %vm51, %v310, %v322
    %328 = vrot.lane.b32.xlu0 %v281, 1
    %v329 = vpop.permute.xlu0 %328
    %331 = vrot.lane.b32.xlu0 %v278, 1
    %v332 = vpop.permute.xlu0 %331
    %v333 = vsel %vm83, %v332, %v329
    %v336 = vsel %vm83, %v329, %v332
    %337 = vrot.lane.b32.xlu0 %v278, 127
    %v338 = vpop.permute.xlu0 %337
    %339 = vrot.lane.b32.xlu0 %v281, 127
    %v340 = vpop.permute.xlu0 %339
    %v341 = vsel %vm92, %v338, %v340
    %v345 = vsel %vm92, %v340, %v338
    %v346 = vsel %vm48, %v341, %v336
    %v347 = vsel %vm49, %v345, %v333
    %v348 = vsel %vm50, %v336, %v341
    %v349 = vsel %vm51, %v333, %v345
    %v350 = vrot.slane %v275, 4
    %v351 = vrot.slane %v273, 4
    %v356 = vrot.slane %v323, 4
    %v357 = vrot.slane %v324, 4
    %v362 = vrot.slane %v325, 4
    %v363 = vrot.slane %v326, 4
    %v366 = vrot.slane %v278, 4
    %v367 = vrot.slane %v281, 4
    %v370 = vsel %vm168, %v301, %v350
    %v371 = vsel %vm168, %v302, %v351
    %v372 = vsel %vm168, %v303, %v356
    %v373 = vsel %vm168, %v304, %v357
    %v374 = vsel %vm168, %v262, %v362
    %v375 = vsel %vm168, %v263, %v363
    %v376 = vsel %vm168, %v346, %v366
    %v377 = vsel %vm168, %v347, %v367
    %v378 = vpack.c.bf16 %v372, %v370
    %v379 = vpack.c.bf16 %v373, %v371
    %v380 = vpack.c.bf16 %v376, %v374
    %v381 = vpack.c.bf16 %v377, %v375
    %v382 = vpack.c.bf16 %v348, %v348
    %v383 = vpack.c.bf16 %v349, %v349
    %385 = vset.pattern.permute.xlu0 0
    %386 = vperm.xlu0 %385, %v55
    %v387 = vpop.permute.xlu0 %386
    %v390 = vsel %vm188, %v54, 0
    %v393 = vsel %vm192, %v382, 0
    %v396 = vsel %vm192, %v383, 0
    %398 = vmatprep.subr.bf16.mxu0 0
    %399 = vmatpush1.bf16.msra.mxu0 0
    %400 = vmatprep.subr.bf16.mxu0 0
    %401 = vmatpush1.bf16.msra.mxu0 0
    %402 = vmatprep.subr.bf16.mxu0 0
    %403 = vmatpush1.bf16.msra.mxu0 0
    %404 = vmatprep.subr.bf16.mxu0 0
    %405 = vmatpush1.bf16.msra.mxu0 0
    %406 = vmatprep.subr.bf16.mxu0 0
    %407 = vmatpush1.bf16.msra.mxu0 0
    %408 = vmatprep.subr.bf16.mxu0 %v396
    %409 = vmatpush1.bf16.msra.mxu0 %v393
    %410 = vmatprep.subr.bf16.mxu0 %v381
    %411 = vmatpush1.bf16.msra.mxu0 %v380
    %412 = vmatprep.subr.bf16.mxu0 %v379
    %413 = vmatpush1.bf16.msra.mxu0 %v378
    %414 = vmatprep.subr.bf16.mxu0 0
    %415 = vmatpush2.bf16.msra.mxu0 0
    %416 = vmatprep.subr.bf16.mxu0 0
    %417 = vmatpush2.bf16.msra.mxu0 0
    %418 = vmatprep.subr.bf16.mxu0 0
    %419 = vmatpush2.bf16.msra.mxu0 0
    %420 = vmatprep.subr.bf16.mxu0 0
    %421 = vmatpush2.bf16.msra.mxu0 0
    %422 = vmatprep.subr.bf16.mxu0 0
    %423 = vmatpush2.bf16.msra.mxu0 0
    %424 = vmatprep.subr.bf16.mxu0 0
    %425 = vmatpush2.bf16.msra.mxu0 0
    %426 = vmatprep.subr.bf16.mxu0 0
    %427 = vmatpush2.bf16.msra.mxu0 0
    %428 = vmatprep.subr.bf16.mxu0 0
    %429 = vmatpush2.bf16.msra.mxu0 0
    %430 = vmatprep.mubr.bf16.mxu0 0
    %431 = vmatmul.mubr.bf16.gmra.mxu0 %v390
    %v432 = vpop.f32.mrf.mxu0
    %v433 = vadd.f32 %v387, %v432
    %v434 = vpop.f32.mrf.mxu0
    %v435 = vadd.f32 %v387, %v434
    %v436 = vpop.f32.mrf.mxu0
    %v437 = vpop.f32.mrf.mxu0
    %438 = vdwg.mxu0
    %v439 = vsel %vm168, %v433, 0.0
    %v440 = vsel %vm168, %v435, 0.0
    %v441 = vadd.f32 %v439, %v440
    %442 = vadd.xlane.f32.xlu0 %v441
    %v443 = vpop.xlane.xlu0 %442
    %v444 = vmul.f32 %v433, %v433
    %v445 = vmul.f32 %v435, %v435
    %v446 = vsel %vm168, %v444, 0.0
    %v447 = vsel %vm168, %v445, 0.0
    %v448 = vadd.f32 %v446, %v447
    %449 = vadd.xlane.f32.xlu0 %v448
    %v450 = vpop.xlane.xlu0 %449
    %v451 = vmul.f32 %v443, 0.00390625
    %v452 = vmul.f32 %v450, 0.00390625
    %v453 = vmul.f32 %v451, %v451
    %v454 = vsub.f32 %v452, %v453
    %v455 = vsub.f32 %v433, %v451
    %v456 = vsub.f32 %v435, %v451
    %v457 = vadd.f32 %v454, 1e-05
    %v458 = vrsqrt.pop %v457
    %v459 = vmul.f32 %v455, %v458
    %v460 = vmul.f32 %v456, %v458
    %v463 = vcombine.low %v459, %v460
    %v465 = vadd.f32 %v56, %v463
    %466 = vst [vmem:[#allocation5] sm:$0xff] %v465
    %s467 = scalar_lea.vmem [#allocation2], 8
    %v468 = vld [vmem:[%s467] sm:$0xff]
    %470 = vrot.lane.b32.xlu0 %v468, 112
    %v471 = vpop.permute.xlu0 %470
    %v473 = vcombine.high %v468, %v468
    %474 = vrot.lane.b32.xlu0 %v468, 16
    %v475 = vpop.permute.xlu0 %474
    %476 = vrot.lane.b32.xlu0 %v473, 16
    %v477 = vpop.permute.xlu0 %476
    %v478 = vsel %vm66, %v475, %v477
    %v480 = vsel %vm66, %v471, %v475
    %481 = vrot.lane.b32.xlu0 %v473, 112
    %v482 = vpop.permute.xlu0 %481
    %v483 = vsel %vm72, %v471, %v482
    %v486 = vsel %vm72, %v482, %v477
    %487 = vrot.lane.b32.xlu0 %v478, 1
    %v488 = vpop.permute.xlu0 %487
    %491 = vrot.lane.b32.xlu0 %v480, 1
    %v492 = vpop.permute.xlu0 %491
    %v493 = vsel %vm83, %v492, %v488
    %v496 = vsel %vm83, %v488, %v492
    %497 = vrot.lane.b32.xlu0 %v480, 127
    %v498 = vpop.permute.xlu0 %497
    %499 = vrot.lane.b32.xlu0 %v478, 127
    %v500 = vpop.permute.xlu0 %499
    %v501 = vsel %vm92, %v498, %v500
    %v505 = vsel %vm92, %v500, %v498
    %v506 = vsel %vm48, %v501, %v496
    %v507 = vsel %vm49, %v505, %v493
    %v508 = vsel %vm50, %v496, %v501
    %v509 = vsel %vm51, %v493, %v505
    %510 = vrot.lane.b32.xlu0 %v473, 1
    %v511 = vpop.permute.xlu0 %510
    %513 = vrot.lane.b32.xlu0 %v468, 1
    %v514 = vpop.permute.xlu0 %513
    %v515 = vsel %vm83, %v514, %v511
    %v518 = vsel %vm83, %v511, %v514
    %519 = vrot.lane.b32.xlu0 %v468, 127
    %v520 = vpop.permute.xlu0 %519
    %521 = vrot.lane.b32.xlu0 %v473, 127
    %v522 = vpop.permute.xlu0 %521
    %v523 = vsel %vm92, %v520, %v522
    %v527 = vsel %vm92, %v522, %v520
    %v528 = vsel %vm48, %v523, %v518
    %v529 = vsel %vm49, %v527, %v515
    %v530 = vsel %vm50, %v518, %v523
    %v531 = vsel %vm51, %v515, %v527
    %533 = vrot.lane.b32.xlu0 %v486, 1
    %v534 = vpop.permute.xlu0 %533
    %536 = vrot.lane.b32.xlu0 %v483, 1
    %v537 = vpop.permute.xlu0 %536
    %v538 = vsel %vm83, %v537, %v534
    %v541 = vsel %vm83, %v534, %v537
    %542 = vrot.lane.b32.xlu0 %v483, 127
    %v543 = vpop.permute.xlu0 %542
    %544 = vrot.lane.b32.xlu0 %v486, 127
    %v545 = vpop.permute.xlu0 %544
    %v546 = vsel %vm92, %v543, %v545
    %v550 = vsel %vm92, %v545, %v543
    %v551 = vsel %vm48, %v546, %v541
    %v552 = vsel %vm49, %v550, %v538
    %v553 = vsel %vm50, %v541, %v546
    %v554 = vsel %vm51, %v538, %v550
    %v555 = vrot.slane %v480, 4
    %v556 = vrot.slane %v478, 4
    %v561 = vrot.slane %v528, 4
    %v562 = vrot.slane %v529, 4
    %v568 = vrot.slane %v530, 4
    %v569 = vrot.slane %v531, 4
    %v572 = vrot.slane %v483, 4
    %v573 = vrot.slane %v486, 4
    %v576 = vsel %vm168, %v506, %v555
    %v577 = vsel %vm168, %v507, %v556
    %v578 = vsel %vm168, %v508, %v561
    %v579 = vsel %vm168, %v509, %v562
    %v580 = vsel %vm168, %v468, %v568
    %v581 = vsel %vm168, %v473, %v569
    %v582 = vsel %vm168, %v551, %v572
    %v583 = vsel %vm168, %v552, %v573
    %v584 = vpack.c.bf16 %v578, %v576
    %v585 = vpack.c.bf16 %v579, %v577
    %v586 = vpack.c.bf16 %v582, %v580
    %v587 = vpack.c.bf16 %v583, %v581
    %v588 = vpack.c.bf16 %v553, %v553
    %v589 = vpack.c.bf16 %v554, %v554
    %v591 = vsel %vm192, %v588, 0
    %v594 = vsel %vm192, %v589, 0
    %596 = vmatprep.subr.bf16.mxu0 0
    %597 = vmatpush1.bf16.msra.mxu0 0
    %598 = vmatprep.subr.bf16.mxu0 0
    %599 = vmatpush1.bf16.msra.mxu0 0
    %600 = vmatprep.subr.bf16.mxu0 0
    %601 = vmatpush1.bf16.msra.mxu0 0
    %602 = vmatprep.subr.bf16.mxu0 0
    %603 = vmatpush1.bf16.msra.mxu0 0
    %604 = vmatprep.subr.bf16.mxu0 0
    %605 = vmatpush1.bf16.msra.mxu0 0
    %606 = vmatprep.subr.bf16.mxu0 %v594
    %607 = vmatpush1.bf16.msra.mxu0 %v591
    %608 = vmatprep.subr.bf16.mxu0 %v587
    %609 = vmatpush1.bf16.msra.mxu0 %v586
    %610 = vmatprep.subr.bf16.mxu0 %v585
    %611 = vmatpush1.bf16.msra.mxu0 %v584
    %612 = vmatprep.subr.bf16.mxu0 0
    %613 = vmatpush2.bf16.msra.mxu0 0
    %614 = vmatprep.subr.bf16.mxu0 0
    %615 = vmatpush2.bf16.msra.mxu0 0
    %616 = vmatprep.subr.bf16.mxu0 0
    %617 = vmatpush2.bf16.msra.mxu0 0
    %618 = vmatprep.subr.bf16.mxu0 0
    %619 = vmatpush2.bf16.msra.mxu0 0
    %620 = vmatprep.subr.bf16.mxu0 0
    %621 = vmatpush2.bf16.msra.mxu0 0
    %622 = vmatprep.subr.bf16.mxu0 0
    %623 = vmatpush2.bf16.msra.mxu0 0
    %624 = vmatprep.subr.bf16.mxu0 0
    %625 = vmatpush2.bf16.msra.mxu0 0
    %626 = vmatprep.subr.bf16.mxu0 0
    %627 = vmatpush2.bf16.msra.mxu0 0
    %628 = vmatprep.mubr.bf16.mxu0 0
    %629 = vmatmul.mubr.bf16.gmra.mxu0 %v190
    %v630 = vpop.f32.mrf.mxu0
    %v631 = vadd.f32 %v186, %v630
    %v632 = vpop.f32.mrf.mxu0
    %v633 = vadd.f32 %v186, %v632
    %v634 = vpop.f32.mrf.mxu0
    %v635 = vpop.f32.mrf.mxu0
    %636 = vdwg.mxu0
    %v637 = vsel %vm168, %v631, 0.0
    %v638 = vsel %vm168, %v633, 0.0
    %v639 = vadd.f32 %v637, %v638
    %640 = vadd.xlane.f32.xlu0 %v639
    %v641 = vpop.xlane.xlu0 %640
    %v642 = vmul.f32 %v631, %v631
    %v643 = vmul.f32 %v633, %v633
    %v644 = vsel %vm168, %v642, 0.0
    %v645 = vsel %vm168, %v643, 0.0
    %v646 = vadd.f32 %v644, %v645
    %647 = vadd.xlane.f32.xlu0 %v646
    %v648 = vpop.xlane.xlu0 %647
    %v649 = vmul.f32 %v641, 0.00390625
    %v650 = vmul.f32 %v648, 0.00390625
    %v651 = vmul.f32 %v649, %v649
    %v652 = vsub.f32 %v650, %v651
    %v653 = vsub.f32 %v631, %v649
    %v654 = vsub.f32 %v633, %v649
    %v655 = vadd.f32 %v652, 1e-05
    %v656 = vrsqrt.pop %v655
    %v657 = vmul.f32 %v653, %v656
    %v658 = vmul.f32 %v654, %v656
    %v659 = vmax.f32 %v657, 0.0
    %v660 = vmax.f32 %v658, 0.0
    %662 = vrot.lane.b32.xlu0 %v659, 112
    %v663 = vpop.permute.xlu0 %662
    %666 = vrot.lane.b32.xlu0 %v659, 16
    %v667 = vpop.permute.xlu0 %666
    %668 = vrot.lane.b32.xlu0 %v660, 16
    %v669 = vpop.permute.xlu0 %668
    %v670 = vsel %vm66, %v667, %v669
    %v672 = vsel %vm66, %v663, %v667
    %673 = vrot.lane.b32.xlu0 %v660, 112
    %v674 = vpop.permute.xlu0 %673
    %v675 = vsel %vm72, %v663, %v674
    %v678 = vsel %vm72, %v674, %v669
    %679 = vrot.lane.b32.xlu0 %v670, 1
    %v680 = vpop.permute.xlu0 %679
    %683 = vrot.lane.b32.xlu0 %v672, 1
    %v684 = vpop.permute.xlu0 %683
    %v685 = vsel %vm83, %v684, %v680
    %v688 = vsel %vm83, %v680, %v684
    %689 = vrot.lane.b32.xlu0 %v672, 127
    %v690 = vpop.permute.xlu0 %689
    %691 = vrot.lane.b32.xlu0 %v670, 127
    %v692 = vpop.permute.xlu0 %691
    %v693 = vsel %vm92, %v690, %v692
    %v697 = vsel %vm92, %v692, %v690
    %v698 = vsel %vm48, %v693, %v688
    %v699 = vsel %vm49, %v697, %v685
    %v700 = vsel %vm50, %v688, %v693
    %v701 = vsel %vm51, %v685, %v697
    %702 = vrot.lane.b32.xlu0 %v660, 1
    %v703 = vpop.permute.xlu0 %702
    %705 = vrot.lane.b32.xlu0 %v659, 1
    %v706 = vpop.permute.xlu0 %705
    %v707 = vsel %vm83, %v706, %v703
    %v710 = vsel %vm83, %v703, %v706
    %711 = vrot.lane.b32.xlu0 %v659, 127
    %v712 = vpop.permute.xlu0 %711
    %713 = vrot.lane.b32.xlu0 %v660, 127
    %v714 = vpop.permute.xlu0 %713
    %v715 = vsel %vm92, %v712, %v714
    %v719 = vsel %vm92, %v714, %v712
    %v720 = vsel %vm48, %v715, %v710
    %v721 = vsel %vm49, %v719, %v707
    %v722 = vsel %vm50, %v710, %v715
    %v723 = vsel %vm51, %v707, %v719
    %725 = vrot.lane.b32.xlu0 %v678, 1
    %v726 = vpop.permute.xlu0 %725
    %728 = vrot.lane.b32.xlu0 %v675, 1
    %v729 = vpop.permute.xlu0 %728
    %v730 = vsel %vm83, %v729, %v726
    %v733 = vsel %vm83, %v726, %v729
    %734 = vrot.lane.b32.xlu0 %v675, 127
    %v735 = vpop.permute.xlu0 %734
    %736 = vrot.lane.b32.xlu0 %v678, 127
    %v737 = vpop.permute.xlu0 %736
    %v738 = vsel %vm92, %v735, %v737
    %v742 = vsel %vm92, %v737, %v735
    %v743 = vsel %vm48, %v738, %v733
    %v744 = vsel %vm49, %v742, %v730
    %v745 = vsel %vm50, %v733, %v738
    %v746 = vsel %vm51, %v730, %v742
    %v747 = vrot.slane %v672, 4
    %v748 = vrot.slane %v670, 4
    %v753 = vrot.slane %v720, 4
    %v754 = vrot.slane %v721, 4
    %v759 = vrot.slane %v722, 4
    %v760 = vrot.slane %v723, 4
    %v763 = vrot.slane %v675, 4
    %v764 = vrot.slane %v678, 4
    %v767 = vsel %vm168, %v698, %v747
    %v768 = vsel %vm168, %v699, %v748
    %v769 = vsel %vm168, %v700, %v753
    %v770 = vsel %vm168, %v701, %v754
    %v771 = vsel %vm168, %v659, %v759
    %v772 = vsel %vm168, %v660, %v760
    %v773 = vsel %vm168, %v743, %v763
    %v774 = vsel %vm168, %v744, %v764
    %v775 = vpack.c.bf16 %v769, %v767
    %v776 = vpack.c.bf16 %v770, %v768
    %v777 = vpack.c.bf16 %v773, %v771
    %v778 = vpack.c.bf16 %v774, %v772
    %v779 = vpack.c.bf16 %v745, %v745
    %v780 = vpack.c.bf16 %v746, %v746
    %v782 = vsel %vm192, %v779, 0
    %v785 = vsel %vm192, %v780, 0
    %787 = vmatprep.subr.bf16.mxu0 0
    %788 = vmatpush1.bf16.msra.mxu0 0
    %789 = vmatprep.subr.bf16.mxu0 0
    %790 = vmatpush1.bf16.msra.mxu0 0
    %791 = vmatprep.subr.bf16.mxu0 0
    %792 = vmatpush1.bf16.msra.mxu0 0
    %793 = vmatprep.subr.bf16.mxu0 0
    %794 = vmatpush1.bf16.msra.mxu0 0
    %795 = vmatprep.subr.bf16.mxu0 0
    %796 = vmatpush1.bf16.msra.mxu0 0
    %797 = vmatprep.subr.bf16.mxu0 %v785
    %798 = vmatpush1.bf16.msra.mxu0 %v782
    %799 = vmatprep.subr.bf16.mxu0 %v778
    %800 = vmatpush1.bf16.msra.mxu0 %v777
    %801 = vmatprep.subr.bf16.mxu0 %v776
    %802 = vmatpush1.bf16.msra.mxu0 %v775
    %803 = vmatprep.subr.bf16.mxu0 0
    %804 = vmatpush2.bf16.msra.mxu0 0
    %805 = vmatprep.subr.bf16.mxu0 0
    %806 = vmatpush2.bf16.msra.mxu0 0
    %807 = vmatprep.subr.bf16.mxu0 0
    %808 = vmatpush2.bf16.msra.mxu0 0
    %809 = vmatprep.subr.bf16.mxu0 0
    %810 = vmatpush2.bf16.msra.mxu0 0
    %811 = vmatprep.subr.bf16.mxu0 0
    %812 = vmatpush2.bf16.msra.mxu0 0
    %813 = vmatprep.subr.bf16.mxu0 0
    %814 = vmatpush2.bf16.msra.mxu0 0
    %815 = vmatprep.subr.bf16.mxu0 0
    %816 = vmatpush2.bf16.msra.mxu0 0
    %817 = vmatprep.subr.bf16.mxu0 0
    %818 = vmatpush2.bf16.msra.mxu0 0
    %819 = vmatprep.mubr.bf16.mxu0 0
    %820 = vmatmul.mubr.bf16.gmra.mxu0 %v390
    %v821 = vpop.f32.mrf.mxu0
    %v822 = vadd.f32 %v387, %v821
    %v823 = vpop.f32.mrf.mxu0
    %v824 = vadd.f32 %v387, %v823
    %v825 = vpop.f32.mrf.mxu0
    %v826 = vpop.f32.mrf.mxu0
    %827 = vdwg.mxu0
    %v828 = vsel %vm168, %v822, 0.0
    %v829 = vsel %vm168, %v824, 0.0
    %v830 = vadd.f32 %v828, %v829
    %831 = vadd.xlane.f32.xlu0 %v830
    %v832 = vpop.xlane.xlu0 %831
    %v833 = vmul.f32 %v822, %v822
    %v834 = vmul.f32 %v824, %v824
    %v835 = vsel %vm168, %v833, 0.0
    %v836 = vsel %vm168, %v834, 0.0
    %v837 = vadd.f32 %v835, %v836
    %838 = vadd.xlane.f32.xlu0 %v837
    %v839 = vpop.xlane.xlu0 %838
    %v840 = vmul.f32 %v832, 0.00390625
    %v841 = vmul.f32 %v839, 0.00390625
    %v842 = vmul.f32 %v840, %v840
    %v843 = vsub.f32 %v841, %v842
    %v844 = vsub.f32 %v822, %v840
    %v845 = vsub.f32 %v824, %v840
    %v846 = vadd.f32 %v843, 1e-05
    %v847 = vrsqrt.pop %v846
    %v848 = vmul.f32 %v844, %v847
    %v849 = vmul.f32 %v845, %v847
    %v852 = vcombine.low %v848, %v849
    %v854 = vadd.f32 %v468, %v852
    %s855 = scalar_lea.vmem [#allocation5], 8
    %856 = vst [vmem:[%s855] sm:$0xff] %v854
    // Predicated region
    $region30: #{tpu_custom_call.1} parent=1 // pred_check
      _
    $region31: #{tpu_custom_call.1} parent=1 // pred_check_branch
      %858 = sbr.rel (0) target = $region33
    $region32: #{tpu_custom_call.1} parent=1 // pred_region
      %s860 = ssub.s32 256, 256
      %861 = vsyncadd [#allocation4], %s860
      %s862 = sshll.u32 [#allocation5], 4
      %s863 = int_to_ptr.vmem [resolvable:$true] %s862
      %868 = dma.vmem_to_hbm [thread:$0]  %s863, 256, %s6, [#allocation4], 128, 128, 8
    $region33: #{tpu_custom_call.1} parent=1 // pred_fallthru
      _
    // Predicated region
    $region34: #{tpu_custom_call.1} parent=1 // pred_check
      _
    $region35: #{tpu_custom_call.1} parent=1 // pred_check_branch
      %870 = sbr.rel (0) target = $region37
    $region36: #{tpu_custom_call.1} parent=1 // pred_region
      %871 = dma.done [#allocation4], 256
    $region37: #{tpu_custom_call.1} parent=1 // pred_fallthru
      _
    %872 = vsyncpa [#allocation3], 1
    %873 = vsyncpa [#allocation4], 1

</llo_original>
